<compile_context>
chip_gen: v5e
topology: v5e:2x2
jax: 0.10.0
libtpu: 0.0.40
codegen_flags: <defaults>
</compile_context>

<pallas_src>
import jax
import jax.numpy as jnp
from jax.experimental import pallas as pl
from jax.experimental.pallas import tpu as pltpu


# ----------------------------------------------------------------------------
# Pallas kernel: batched GNNPolicy forward (both towers fused, BB graphs / block)
# ----------------------------------------------------------------------------
def gnn_policy_kernel(m_ref, p_ref, o_ref):
    bb = o_ref.shape[0]               # graphs per grid block
    tfp = p_ref.shape[1]              # fused two-tower padded feature width (2*FP)
    fp = tfp // 2
    bbn = m_ref.shape[0] - 2 * bb     # stacked node count (bb * N)

    M = m_ref[...]                    # (bbn + 2*bb, lanes) packed per-block slab
    P = p_ref[...]                    # (7*fp, tfp)         packed parameters (resident)

    A = M[0:bbn, 0:bbn]               # block-diagonal normalized adjacency
    A_sel = M[bbn:bbn + 2 * bb, 0:bbn]        # [src rows ; dst rows] of A
    x_col = M[0:bbn, bbn:bbn + 1]             # node features as a column (arch[0] == 1)

    w1_row = P[0:1, :]                # fused layer-1 weight row  [w11 | w21]
    b1 = P[fp:fp + 1, :]              # fused layer-1 bias
    b2 = P[2 * fp:2 * fp + 1, :]      # fused layer-2 bias
    w2 = P[3 * fp:5 * fp, :]          # block-diagonal fused layer-2 weight
    sel = P[5 * fp:7 * fp, :]         # tower-selector (col 0 = tower 1, col 1 = tower 2)

    # Layer 1: rank-1 feature transform on the VPU, one MXU aggregation.
    h0 = x_col * w1_row                                              # (bbn, tfp)
    h = jnp.dot(A, h0, preferred_element_type=jnp.float32) + b1
    h = jnp.maximum(h, 0.0)

    # Layer 2 (reassociated): select src/dst rows of the aggregation first.
    t = jnp.dot(A_sel, h, preferred_element_type=jnp.float32)        # (2*bb, tfp)
    y = jnp.dot(t, w2, preferred_element_type=jnp.float32) + b2      # (2*bb, tfp)

    # Edge readout: per-graph (y[src] * y[dst]), summed per tower via the selector.
    prod = y[0:bb, :] * y[bb:2 * bb, :]                               # (bb, tfp)
    scores = jnp.dot(prod, sel, preferred_element_type=jnp.float32)  # (bb, tfp); cols >= 2 are 0
    o_ref[...] = scores[:, 0:2]                                       # one (bb, 2) store


def gnn_policy_pallas(m_all, param_slab, batch, bb):
    assert batch % bb == 0
    nb = batch // bb
    rows_per_block = m_all.shape[0] // nb
    lanes = m_all.shape[1]
    return pl.pallas_call(
        gnn_policy_kernel,
        out_shape=jax.ShapeDtypeStruct((batch, 2), jnp.float32),
        grid_spec=pltpu.PrefetchScalarGridSpec(
            num_scalar_prefetch=0,
            grid=(nb,),
            in_specs=[
                pl.BlockSpec((rows_per_block, lanes), lambda i: (i, 0)),
                pl.BlockSpec(param_slab.shape, lambda i: (0, 0)),  # constant -> re-fetch elided
            ],
            out_specs=pl.BlockSpec((bb, 2), lambda i: (i, 0)),
        ),
        compiler_params=pltpu.CompilerParams(
            dimension_semantics=("parallel",)),   # v7x: shard batch blocks across both TCs
    )(m_all, param_slab)


# ----------------------------------------------------------------------------
# Glue: GCN normalization, deterministic params, packing
# ----------------------------------------------------------------------------
def build_norm_adj(edge_index, num_nodes):
    """Dense D^{-1/2}(A+I)D^{-1/2}, matching torch_geometric GCNConv gcn_norm."""
    row = edge_index[0]  # source nodes j
    col = edge_index[1]  # target nodes i
    loop = jnp.arange(num_nodes, dtype=edge_index.dtype)
    row = jnp.concatenate([row, loop])
    col = jnp.concatenate([col, loop])
    w = jnp.ones(row.shape[0], jnp.float32)
    deg = jnp.zeros(num_nodes, jnp.float32).at[col].add(w)
    dis = jnp.where(deg > 0, 1.0 / jnp.sqrt(deg), 0.0)
    norm = dis[row] * w * dis[col]
    A = jnp.zeros((num_nodes, num_nodes), jnp.float32).at[col, row].add(norm)
    return A


def init_params(key, arch):
    """Two towers of [GCNConv(arch[0],arch[1]), ReLU, GCNConv(arch[1],arch[2])]."""
    def glorot(k, fan_in, fan_out):
        scale = jnp.sqrt(6.0 / (fan_in + fan_out))
        return jax.random.uniform(k, (fan_in, fan_out), jnp.float32, -scale, scale)

    keys = jax.random.split(key, 4)
    params = {}
    for t, (kw1, kw2) in enumerate([(keys[0], keys[1]), (keys[2], keys[3])], start=1):
        params[f"w{t}1"] = glorot(kw1, arch[0], arch[1])
        params[f"b{t}1"] = jnp.zeros((arch[1],), jnp.float32)
        params[f"w{t}2"] = glorot(kw2, arch[1], arch[2])
        params[f"b{t}2"] = jnp.zeros((arch[2],), jnp.float32)
    return params


def pack_params(params, arch, fp):
    """Pack both towers + readout selector into one (7*fp, 2*fp) slab.
    Row layout (8-row-aligned static slices in the kernel):
      row 0          : fused layer-1 weight row  [w11 | w21]   (arch[0] == 1)
      row fp         : fused layer-1 bias        [b11 | b21]
      row 2*fp       : fused layer-2 bias        [b12 | b22]
      rows [3fp,5fp) : block-diagonal fused W2   diag(w12, w22)
      rows [5fp,7fp) : tower selector S (col 0 sums tower-1 lanes, col 1 tower-2)
    """
    tfp = 2 * fp
    slab = jnp.zeros((7 * fp, tfp), jnp.float32)
    slab = slab.at[0, :arch[1]].set(params["w11"][0])
    slab = slab.at[0, fp:fp + arch[1]].set(params["w21"][0])
    slab = slab.at[fp, :arch[1]].set(params["b11"])
    slab = slab.at[fp, fp:fp + arch[1]].set(params["b21"])
    slab = slab.at[2 * fp, :arch[2]].set(params["b12"])
    slab = slab.at[2 * fp, fp:fp + arch[2]].set(params["b22"])
    slab = slab.at[3 * fp:3 * fp + arch[1], :arch[2]].set(params["w12"])
    slab = slab.at[4 * fp:4 * fp + arch[1], fp:fp + arch[2]].set(params["w22"])
    slab = slab.at[5 * fp:6 * fp, 0].set(1.0)
    slab = slab.at[6 * fp:7 * fp, 1].set(1.0)

    # Readout invariant: the kernel sums ALL fp lanes per tower, so the padded
    # layer-2 output lanes must be exactly zero (zero W2 columns + zero b2 lanes).
    w2_blk = slab[3 * fp:5 * fp, :]
    b2_row = slab[2 * fp, :]
    pad_ok = (jnp.all(w2_blk[:, arch[2]:fp] == 0.0)
              & jnp.all(w2_blk[:, fp + arch[2]:] == 0.0)
              & jnp.all(b2_row[arch[2]:fp] == 0.0)
              & jnp.all(b2_row[fp + arch[2]:] == 0.0))
    assert bool(pad_ok), "padded layer-2 columns / bias lanes must be exactly zero"
    return slab


def pack_batch(A_list, x_list, src_list, dst_list, bb, n, lanes=128):
    """Pack bb graphs per grid block into one lane-dense slab:
         rows [0, bb*n)          : block-diagonal normalized adjacency
         rows [bb*n, bb*n+bb)    : per-graph A[src] row (block-diag coordinates)
         rows [bb*n+bb, bb*n+2bb): per-graph A[dst] row
         column bb*n             : stacked node features (arch[0] == 1)
    """
    B = len(A_list)
    assert B % bb == 0
    nb = B // bb
    bbn = bb * n
    rows_per_block = bbn + 2 * bb
    assert rows_per_block % 8 == 0 and bbn + 1 <= lanes
    M = jnp.zeros((nb * rows_per_block, lanes), jnp.float32)
    for g in range(B):
        blk, j = divmod(g, bb)
        r0 = blk * rows_per_block
        c0 = j * n
        A = A_list[g]
        M = M.at[r0 + c0:r0 + c0 + n, c0:c0 + n].set(A)
        M = M.at[r0 + bbn + j, c0:c0 + n].set(A[src_list[g]])
        M = M.at[r0 + bbn + bb + j, c0:c0 + n].set(A[dst_list[g]])
        M = M.at[r0 + c0:r0 + c0 + n, bbn].set(x_list[g][:, 0])
    return M


def reference_forward(A, x, params, src, dst):
    """Pure-JAX reference mirroring the PyTorch module semantics (one env)."""
    def tower(w1, b1, w2, b2):
        h = jnp.maximum(A @ (x @ w1) + b1, 0.0)
        return A @ (h @ w2) + b2

    y1 = tower(params["w11"], params["b11"], params["w12"], params["b12"])
    y2 = tower(params["w21"], params["b21"], params["w22"], params["b22"])
    l1 = jnp.sum(y1[src] * y1[dst])
    l2 = jnp.sum(y2[src] * y2[dst])
    return jnp.stack([l1, l2])


# ----------------------------------------------------------------------------
if __name__ == "__main__":
    arch = [1, 4, 4]
    N = 8          # nodes per synthetic env graph
    B = 16         # batched forward passes (envs) per pallas_call
    BB = 8         # graphs per grid block
    FP = 8         # padded per-tower feature width inside the kernel

    key = jax.random.PRNGKey(0)
    kx, kp = jax.random.split(key)

    params = init_params(kp, arch)
    param_slab = pack_params(params, arch, FP)

    # Synthetic batch of GameEnvs: ring graph + one chord, random node features,
    # per-env (src, dst) query.
    A_list, x_list, src_list, dst_list = [], [], [], []
    xkeys = jax.random.split(kx, B)
    base = jnp.arange(N, dtype=jnp.int32)
    nxt = (base + 1) % N
    for g in range(B):
        chord = (g % 5) + 2
        src_e = jnp.concatenate([base, nxt, jnp.array([0, chord], jnp.int32)])
        dst_e = jnp.concatenate([nxt, base, jnp.array([chord, 0], jnp.int32)])
        edge_index = jnp.stack([src_e, dst_e])
        A_list.append(build_norm_adj(edge_index, N))
        x_list.append(jax.random.normal(xkeys[g], (N, arch[0]), jnp.float32))
        src_list.append(g % N)
        dst_list.append((3 * g + 5) % N)

    m_all = pack_batch(A_list, x_list, src_list, dst_list, BB, N)

    out = gnn_policy_pallas(m_all, param_slab, B, BB)
    out = jax.block_until_ready(out)

    ref = jnp.stack([
        reference_forward(A_list[g], x_list[g], params, src_list[g], dst_list[g])
        for g in range(B)
    ])

    assert out.shape == (B, 2)
    # 1e-4 tolerance: kernel and XLA reference may use different f32 MXU pass schedules.
    assert jnp.allclose(out, ref, atol=1e-4, rtol=1e-4), (out, ref)

    # TODO(synk): GameEnv / edge_index construction and GCN adjacency normalization
    # (gcn_norm) have no Pallas equivalent; they are synthesized here as plain-JAX glue.
    print("KERNEL_OK")
</pallas_src>

<mosaic_0001>
module attributes {stable_mosaic.version = 11 : i64} {
  func.func @gnn_policy_kernel(%arg0: i32, %arg1: memref<80x128xf32, #tpu.memory_space<vmem>>, %arg2: memref<56x16xf32, #tpu.memory_space<vmem>>, %arg3: memref<8x2xf32, #tpu.memory_space<vmem>>) attributes {dimension_semantics = [#tpu.dimension_semantics<parallel>], iteration_bounds = array<i64: 2>, scalar_prefetch = 0 : i64, scratch_operands = 0 : i64, tpu.core_type = #tpu.core_type<tc>, window_params = [{transform_indices = @transform_0, window_bounds = array<i64: 80, 128>}, {pipeline_mode = #tpu.pipeline_mode<synchronous>, transform_indices = @transform_1, window_bounds = array<i64: 56, 16>}, {transform_indices = @transform_2, window_bounds = array<i64: 8, 2>}]} {
    %c0 = arith.constant 0 : index
    %c0_0 = arith.constant 0 : index
    %0 = vector.load %arg1[%c0, %c0_0] : memref<80x128xf32, #tpu.memory_space<vmem>>, vector<80x128xf32>
    %c0_1 = arith.constant 0 : index
    %c0_2 = arith.constant 0 : index
    %1 = vector.load %arg2[%c0_1, %c0_2] : memref<56x16xf32, #tpu.memory_space<vmem>>, vector<56x16xf32>
    %2 = vector.extract_strided_slice %0 {offsets = [0, 0], sizes = [64, 64], strides = [1, 1]} : vector<80x128xf32> to vector<64x64xf32>
    %3 = vector.extract_strided_slice %0 {offsets = [64, 0], sizes = [16, 64], strides = [1, 1]} : vector<80x128xf32> to vector<16x64xf32>
    %4 = vector.extract_strided_slice %0 {offsets = [0, 64], sizes = [64, 1], strides = [1, 1]} : vector<80x128xf32> to vector<64x1xf32>
    %5 = vector.extract_strided_slice %1 {offsets = [0, 0], sizes = [1, 16], strides = [1, 1]} : vector<56x16xf32> to vector<1x16xf32>
    %6 = vector.extract_strided_slice %1 {offsets = [8, 0], sizes = [1, 16], strides = [1, 1]} : vector<56x16xf32> to vector<1x16xf32>
    %7 = vector.extract_strided_slice %1 {offsets = [16, 0], sizes = [1, 16], strides = [1, 1]} : vector<56x16xf32> to vector<1x16xf32>
    %8 = vector.extract_strided_slice %1 {offsets = [24, 0], sizes = [16, 16], strides = [1, 1]} : vector<56x16xf32> to vector<16x16xf32>
    %9 = vector.extract_strided_slice %1 {offsets = [40, 0], sizes = [16, 16], strides = [1, 1]} : vector<56x16xf32> to vector<16x16xf32>
    %10 = vector.broadcast %4 : vector<64x1xf32> to vector<64x16xf32>
    %11 = vector.broadcast %5 : vector<1x16xf32> to vector<64x16xf32>
    %12 = arith.mulf %10, %11 : vector<64x16xf32>
    %cst = arith.constant dense<0.000000e+00> : vector<64x16xf32>
    %13 = tpu.matmul %2, %12, %cst {dimension_numbers = #tpu.dot_dimension_numbers<[1], [0], [0], [1], [0, 0, 1, 1], [], []>} : vector<64x64xf32>, vector<64x16xf32>, vector<64x16xf32> -> vector<64x16xf32>
    %14 = vector.broadcast %6 : vector<1x16xf32> to vector<64x16xf32>
    %15 = arith.addf %13, %14 : vector<64x16xf32>
    %cst_3 = arith.constant 0.000000e+00 : f32
    %16 = vector.broadcast %cst_3 : f32 to vector<64x16xf32>
    %17 = arith.maximumf %15, %16 : vector<64x16xf32>
    %cst_4 = arith.constant dense<0.000000e+00> : vector<16x16xf32>
    %18 = tpu.matmul %3, %17, %cst_4 {dimension_numbers = #tpu.dot_dimension_numbers<[1], [0], [0], [1], [0, 0, 1, 1], [], []>} : vector<16x64xf32>, vector<64x16xf32>, vector<16x16xf32> -> vector<16x16xf32>
    %cst_5 = arith.constant dense<0.000000e+00> : vector<16x16xf32>
    %19 = tpu.matmul %18, %8, %cst_5 {dimension_numbers = #tpu.dot_dimension_numbers<[1], [0], [0], [1], [0, 0, 1, 1], [], []>} : vector<16x16xf32>, vector<16x16xf32>, vector<16x16xf32> -> vector<16x16xf32>
    %20 = vector.broadcast %7 : vector<1x16xf32> to vector<16x16xf32>
    %21 = arith.addf %19, %20 : vector<16x16xf32>
    %22 = vector.extract_strided_slice %21 {offsets = [0, 0], sizes = [8, 16], strides = [1, 1]} : vector<16x16xf32> to vector<8x16xf32>
    %23 = vector.extract_strided_slice %21 {offsets = [8, 0], sizes = [8, 16], strides = [1, 1]} : vector<16x16xf32> to vector<8x16xf32>
    %24 = arith.mulf %22, %23 : vector<8x16xf32>
    %cst_6 = arith.constant dense<0.000000e+00> : vector<8x16xf32>
    %25 = tpu.matmul %24, %9, %cst_6 {dimension_numbers = #tpu.dot_dimension_numbers<[1], [0], [0], [1], [0, 0, 1, 1], [], []>} : vector<8x16xf32>, vector<16x16xf32>, vector<8x16xf32> -> vector<8x16xf32>
    %26 = vector.extract_strided_slice %25 {offsets = [0, 0], sizes = [8, 2], strides = [1, 1]} : vector<8x16xf32> to vector<8x2xf32>
    %c0_7 = arith.constant 0 : index
    %c0_8 = arith.constant 0 : index
    %27 = vector.load %arg3[%c0_7, %c0_8] : memref<8x2xf32, #tpu.memory_space<vmem>>, vector<8x2xf32>
    tpu.vector_store %arg3[%c0_7, %c0_8], %26 {strides = array<i32>} : memref<8x2xf32, #tpu.memory_space<vmem>>, vector<8x2xf32>,
    return
  }
  func.func @transform_0(%arg0: i32) -> (i32, i32) {
    %c0_i32 = arith.constant 0 : i32
    %c0_i32_0 = arith.constant 0 : i32
    return %arg0, %c0_i32 : i32, i32
  }
  func.func @transform_1(%arg0: i32) -> (i32, i32) {
    %c0_i32 = arith.constant 0 : i32
    %c0_i32_0 = arith.constant 0 : i32
    %c0_i32_1 = arith.constant 0 : i32
    return %c0_i32, %c0_i32_0 : i32, i32
  }
  func.func @transform_2(%arg0: i32) -> (i32, i32) {
    %c0_i32 = arith.constant 0 : i32
    %c0_i32_0 = arith.constant 0 : i32
    return %arg0, %c0_i32 : i32, i32
  }
}

</mosaic_0001>

<llo_original>
// kernel: tpu_custom_call.1
$region0: #{tpu_custom_call.1}
  #allocation0 [shape = 'u32[]', space=smem, size = 0x4, offset = 0x4, fixed_abs, tag = 'smem constant byte address 0x4 - core index']
  #allocation1 [shape = 'u32[72,128]{1,0:T(1,128)}', space=vmem, size = 0x9000, scoped, tag = 'internal scratch']
  %s0 = inlined_call_operand.hbm [shape: f32[160,128], index: 0, kind: input, shape index: {}]
  %s1 = inlined_call_operand.vmem [shape: f32[56,16], index: 1, kind: input, shape index: {}]
  %s2 = inlined_call_operand.vmem [shape: f32[16,2], index: 2, kind: output, shape index: {}]
  %s3 = sld [smem:[#allocation0]]
  $region45: #{tpu_custom_call.1} parent=0
    _
  %s5 = ssub.s32 1, %s3
  %s6 = scalar_select 0, %s5, %s3
  $region1: #{tpu_custom_call.1} parent=0
    #allocation2 [shape = 'u8[81920]{0}', space=vmem, size = 0x14000, scoped, tag = 'input window, operand 0']
    #allocation3 [shape = 's32[2]{0}', space=sflag, size = 0x8, scoped, tag = 'scoped memory for tpu_custom_call.1']
    %7 = vsyncpa [#allocation3], 0
    %s8 = scalar_lea.sflag [#allocation3], 1
    %9 = vsyncpa %s8, 0
    loop: start=0, step=1, limit=4
    $region2: #{tpu_custom_call.1} parent=1 // loop_pre_header
      _
    $region3: #{tpu_custom_call.1} parent=1 // loop_header
      %s11 = sphi 0, %s15
      %p12 = scmp.ge.s32.totalorder %s11, 4
      %s21 = sphi 0, %s23
      %s24 = sphi 0, %s21
      %s25 = sphi 0, %s24
      %s41 = sphi 0, %s25
      %s45 = sphi 0, %s45
      %s47 = sphi 0, %s45
      %s48 = sphi 0, %s47
      %s62 = sphi 0, %s48
      %s68 = sphi 0, %s70
      %s71 = sphi 0, %s68
      %s72 = sphi 0, %s71
      %s88 = sphi 0, %s72
    $region4: #{tpu_custom_call.1} parent=1 // loop_header_branch
      %14 = sbr.rel (%p12) target = $region8
    $region5: #{tpu_custom_call.1} parent=1 // loop_body
      %s16 = ssub.s32 %s11, 1
      %s17 = ssub.s32 %s11, 2
      %s18 = sadd.s32 %s11, 1
      %s19 = ssub.s32 %s11, %s18
      %p20 = scmp.eq.s32.totalorder %s19, 0
      %s22 = sadd.s32 %s21, 1
      %s23 = scalar_select %p20, %s21, %s22
      %p26 = pneg %p20
      %p27 = scmp.eq.s32.totalorder %s11, 1
      %p28 = por %p26, %p27
      %p29 = scmp.ne.s32.totalorder %s21, %s24
      %p30 = scmp.eq.s32.totalorder %s11, 0
      %p31 = por %p29, %p30
      %p32 = scmp.ne.s32.totalorder %s21, %s24
      %p33 = scmp.eq.s32.totalorder %s16, 1
      %p34 = por %p32, %p33
      %p35 = scmp.ne.s32.totalorder %s24, %s25
      %p36 = scmp.eq.s32.totalorder %s16, 0
      %p37 = por %p35, %p36
      %p38 = scmp.ne.s32.totalorder %s24, %s25
      %p39 = scmp.eq.s32.totalorder %s17, 1
      %p40 = por %p38, %p39
      %p42 = scmp.ne.s32.totalorder %s25, %s41
      %p43 = scmp.eq.s32.totalorder %s17, 0
      %p44 = por %p42, %p43
      %s46 = sadd.s32 %s45, 1
      %p49 = scmp.eq.s32.totalorder %s11, 1
      %p50 = scmp.ne.s32.totalorder %s45, %s47
      %p51 = scmp.eq.s32.totalorder %s11, 0
      %p52 = por %p50, %p51
      %p53 = scmp.ne.s32.totalorder %s45, %s47
      %p54 = scmp.eq.s32.totalorder %s16, 1
      %p55 = por %p53, %p54
      %p56 = scmp.ne.s32.totalorder %s47, %s48
      %p57 = scmp.eq.s32.totalorder %s16, 0
      %p58 = por %p56, %p57
      %p59 = scmp.ne.s32.totalorder %s47, %s48
      %p60 = scmp.eq.s32.totalorder %s17, 1
      %p61 = por %p59, %p60
      %p63 = scmp.ne.s32.totalorder %s48, %s62
      %p64 = scmp.eq.s32.totalorder %s17, 0
      %p65 = por %p63, %p64
      %s66 = ssub.s32 %s11, %s18
      %p67 = scmp.eq.s32.totalorder %s66, 0
      %s69 = sadd.s32 %s68, 1
      %s70 = scalar_select %p67, %s68, %s69
      %p73 = pneg %p67
      %p74 = scmp.eq.s32.totalorder %s11, 1
      %p75 = por %p73, %p74
      %p76 = scmp.ne.s32.totalorder %s68, %s71
      %p77 = scmp.eq.s32.totalorder %s11, 0
      %p78 = por %p76, %p77
      %p79 = scmp.ne.s32.totalorder %s68, %s71
      %p80 = scmp.eq.s32.totalorder %s16, 1
      %p81 = por %p79, %p80
      %p82 = scmp.ne.s32.totalorder %s71, %s72
      %p83 = scmp.eq.s32.totalorder %s16, 0
      %p84 = por %p82, %p83
      %p85 = scmp.ne.s32.totalorder %s71, %s72
      %p86 = scmp.eq.s32.totalorder %s17, 1
      %p87 = por %p85, %p86
      %p89 = scmp.ne.s32.totalorder %s72, %s88
      %p90 = scmp.eq.s32.totalorder %s17, 0
      %p91 = por %p89, %p90
      %p92 = scmp.le.s32.totalorder 1, %s11
      %p93 = scmp.lt.s32.totalorder %s11, 3
      %p94 = pnand %p92, %p93
      %p95 = pneg %p94
      // Predicated region
      $region9: #{tpu_custom_call.1} parent=5 // pred_check
        _
      $region10: #{tpu_custom_call.1} parent=5 // pred_check_branch
        %97 = sbr.rel (%p94) target = $region12
      $region11: #{tpu_custom_call.1} parent=5 // pred_region
        %s98 = ssub.s32 %s11, 1
        // Predicated region
        $region13: #{tpu_custom_call.1} parent=11 // pred_check
          %p99 = pneg %p58
        $region14: #{tpu_custom_call.1} parent=11 // pred_check_branch
          %101 = sbr.rel (%p99) target = $region16
        $region15: #{tpu_custom_call.1} parent=11 // pred_region
          _
        $region16: #{tpu_custom_call.1} parent=11 // pred_fallthru
          _
      $region12: #{tpu_custom_call.1} parent=5 // pred_fallthru
        _
      %p102 = scmp.lt.s32.totalorder %s11, 2
      // Predicated region
      $region17: #{tpu_custom_call.1} parent=5 // pred_check
        %p103 = pneg %p102
      $region18: #{tpu_custom_call.1} parent=5 // pred_check_branch
        %105 = sbr.rel (%p103) target = $region20
      $region19: #{tpu_custom_call.1} parent=5 // pred_region
        // Predicated region
        $region21: #{tpu_custom_call.1} parent=19 // pred_check
          %p106 = pneg %p31
        $region22: #{tpu_custom_call.1} parent=19 // pred_check_branch
          %108 = sbr.rel (%p106) target = $region24
        $region23: #{tpu_custom_call.1} parent=19 // pred_region
          %s109 = sand.u32 %s21, 1
          %s110 = scalar_lea.sflag [#allocation3], %s109
          %s111 = sand.u32 %s21, 1
          %s112 = smul.addr %s111, 80
          %s113 = scalar_lea.vmem [#allocation2], %s112
          %s114 = smul.u32 10, %s11
          %116 = vsyncadd %s110, 0
          %s117 = smul.addr %s114, 8
          %s118 = scalar_lea.hbm %s0, %s117
          %s119 = sshll.u32 %s118, 4
          %s120 = int_to_ptr.hbm [resolvable:$true] %s119
          %s121 = sshll.u32 %s113, 4
          %s122 = int_to_ptr.vmem [resolvable:$true] %s121
          %127 = dma.hbm_to_vmem [thread:$0]  %s120, 1280, %s122, %s110, 128, 128, 8
        $region24: #{tpu_custom_call.1} parent=19 // pred_fallthru
          _
      $region20: #{tpu_custom_call.1} parent=5 // pred_fallthru
        _
      %p128 = scmp.le.s32.totalorder 1, %s11
      %p129 = scmp.lt.s32.totalorder %s11, 3
      %p130 = pnand %p128, %p129
      %p131 = pneg %p130
      // Predicated region
      $region25: #{tpu_custom_call.1} parent=5 // pred_check
        _
      $region26: #{tpu_custom_call.1} parent=5 // pred_check_branch
        %133 = sbr.rel (%p130) target = $region28
      $region27: #{tpu_custom_call.1} parent=5 // pred_region
        %s134 = ssub.s32 %s11, 1
        %s135 = sand.u32 %s24, 1
        %s136 = scalar_lea.sflag [#allocation3], %s135
        %s137 = sand.u32 %s24, 1
        %s138 = smul.addr %s137, 80
        %s139 = scalar_lea.vmem [#allocation2], %s138
        // Predicated region
        $region29: #{tpu_custom_call.1} parent=27 // pred_check
          %p140 = pneg %p37
        $region30: #{tpu_custom_call.1} parent=27 // pred_check_branch
          %142 = sbr.rel (%p140) target = $region32
        $region31: #{tpu_custom_call.1} parent=27 // pred_region
          %144 = dma.done %s136, 1280
        $region32: #{tpu_custom_call.1} parent=27 // pred_fallthru
          _
        %s145 = sand.u32 %s24, 1
        %s146 = scalar_lea.sflag [#allocation3], %s145
        %s147 = sand.u32 %s24, 1
        %s148 = smul.addr %s147, 80
        %s149 = scalar_lea.vmem [#allocation2], %s148
        %p150 = pneg %p37
        %p151 = pneg %p34
        %p152 = pneg %p58
        %p153 = pneg %p55
        %p154 = pneg %p84
        %p155 = pneg %p81
        %p156 = scmp.lt.s32.totalorder %s16, 1
        %s157 = scalar_select %p156, %s16, 1
        %s158 = smul.addr %s157, 8
        %s159 = scalar_lea.vmem %s2, %s158
        %s160 = smul.u32 10, %s16
        %p161 = scmp.lt.s32.totalorder %s16, 1
        %s162 = scalar_select %p161, %s16, 1
        %s163 = smul.addr %s162, 8
        %s164 = scalar_lea.vmem %s2, %s163
        %v165 = vld [vmem:[%s139] sm:$0xff]
        %v166 = vld [vmem:[%s139 + $0x8] sm:$0xff]
        %v167 = vld [vmem:[%s139 + $0x10] sm:$0xff]
        %v168 = vld [vmem:[%s139 + $0x18] sm:$0xff]
        %v169 = vld [vmem:[%s139 + $0x20] sm:$0xff]
        %v170 = vld [vmem:[%s139 + $0x28] sm:$0xff]
        %v171 = vld [vmem:[%s139 + $0x30] sm:$0xff]
        %v172 = vld [vmem:[%s139 + $0x38] sm:$0xff]
        %v173 = vld [vmem:[%s139 + $0x40] sm:$0xff]
        %v174 = vld [vmem:[%s139 + $0x48] sm:$0xff]
        %v175 = vld [vmem:[%s1] sm:$0xff]
        %v176 = vld [vmem:[%s1 + $0x8] sm:$0xff]
        %v177 = vld [vmem:[%s1 + $0x10] sm:$0xff]
        %v178 = vld [vmem:[%s1 + $0x18] sm:$0xff]
        %v179 = vld [vmem:[%s1 + $0x20] sm:$0xff]
        %v180 = vld [vmem:[%s1 + $0x28] sm:$0xff]
        %v181 = vld [vmem:[%s1 + $0x30] sm:$0xff]
        %183 = vset.pattern.permute.xlu0 64
        %184 = vperm.xlu0 %183, %v165
        %v185 = vpop.permute.xlu0 %184
        %188 = vset.pattern.permute.xlu0 64
        %189 = vperm.xlu0 %188, %v166
        %v190 = vpop.permute.xlu0 %189
        %193 = vset.pattern.permute.xlu0 64
        %194 = vperm.xlu0 %193, %v167
        %v195 = vpop.permute.xlu0 %194
        %198 = vset.pattern.permute.xlu0 64
        %199 = vperm.xlu0 %198, %v168
        %v200 = vpop.permute.xlu0 %199
        %203 = vset.pattern.permute.xlu0 64
        %204 = vperm.xlu0 %203, %v169
        %v205 = vpop.permute.xlu0 %204
        %208 = vset.pattern.permute.xlu0 64
        %209 = vperm.xlu0 %208, %v170
        %v210 = vpop.permute.xlu0 %209
        %213 = vset.pattern.permute.xlu0 64
        %214 = vperm.xlu0 %213, %v171
        %v215 = vpop.permute.xlu0 %214
        %218 = vset.pattern.permute.xlu0 64
        %219 = vperm.xlu0 %218, %v172
        %v220 = vpop.permute.xlu0 %219
        %v222 = vperm.slane %v175, 0
        %v223 = vmul.f32 %v185, %v222
        %v224 = vmul.f32 %v190, %v222
        %v225 = vmul.f32 %v195, %v222
        %v226 = vmul.f32 %v200, %v222
        %v227 = vmul.f32 %v205, %v222
        %v228 = vmul.f32 %v210, %v222
        %v229 = vmul.f32 %v215, %v222
        %v230 = vmul.f32 %v220, %v222
        %v231 = vperm.slane %v176, 0
        %vm232 = vcmask 523264
        %v233 = vsel %vm232, %v165, 0
        %v235 = vsel %vm232, %v166, 0
        %v237 = vsel %vm232, %v167, 0
        %v239 = vsel %vm232, %v168, 0
        %v241 = vsel %vm232, %v169, 0
        %v243 = vsel %vm232, %v170, 0
        %v245 = vsel %vm232, %v171, 0
        %v247 = vsel %vm232, %v172, 0
        %249 = vmatpush.msra.mxu0 0.0
        %250 = vmatpush.msra.mxu0 0.0
        %251 = vmatpush.msra.mxu0 0.0
        %252 = vmatpush.msra.mxu0 0.0
        %253 = vmatpush.msra.mxu0 0.0
        %254 = vmatpush.msra.mxu0 0.0
        %255 = vmatpush.msra.mxu0 0.0
        %256 = vmatpush.msra.mxu0 0.0
        %257 = vmatpush.msra.mxu0 %v230
        %258 = vmatpush.msra.mxu0 %v229
        %259 = vmatpush.msra.mxu0 %v228
        %260 = vmatpush.msra.mxu0 %v227
        %261 = vmatpush.msra.mxu0 %v226
        %262 = vmatpush.msra.mxu0 %v225
        %263 = vmatpush.msra.mxu0 %v224
        %264 = vmatpush.msra.mxu0 %v223
        %265 = vmatmul.f32.gmra.mxu0 %v233
        %v266 = vpop.f32.mrf.mxu0
        %v267 = vadd.f32 %v231, %v266
        %268 = vmatmul.f32.gmra.mxu0 %v235
        %v269 = vpop.f32.mrf.mxu0
        %v270 = vadd.f32 %v231, %v269
        %271 = vmatmul.f32.gmra.mxu0 %v237
        %v272 = vpop.f32.mrf.mxu0
        %v273 = vadd.f32 %v231, %v272
        %274 = vmatmul.f32.gmra.mxu0 %v239
        %v275 = vpop.f32.mrf.mxu0
        %v276 = vadd.f32 %v231, %v275
        %277 = vmatmul.f32.gmra.mxu0 %v241
        %v278 = vpop.f32.mrf.mxu0
        %v279 = vadd.f32 %v231, %v278
        %280 = vmatmul.f32.gmra.mxu0 %v243
        %v281 = vpop.f32.mrf.mxu0
        %v282 = vadd.f32 %v231, %v281
        %283 = vmatmul.f32.gmra.mxu0 %v245
        %v284 = vpop.f32.mrf.mxu0
        %v285 = vadd.f32 %v231, %v284
        %286 = vmatmul.f32.gmra.mxu0 %v247
        %v287 = vpop.f32.mrf.mxu0
        %v288 = vadd.f32 %v231, %v287
        %289 = vdwg.mxu0
        %v290 = vmax.f32 %v267, 0.0
        %v291 = vmax.f32 %v270, 0.0
        %v292 = vmax.f32 %v273, 0.0
        %v293 = vmax.f32 %v276, 0.0
        %v294 = vmax.f32 %v279, 0.0
        %v295 = vmax.f32 %v282, 0.0
        %v296 = vmax.f32 %v285, 0.0
        %v297 = vmax.f32 %v288, 0.0
        %v299 = vsel %vm232, %v173, 0
        %v302 = vsel %vm232, %v174, 0
        %304 = vmatpush.msra.mxu0 0.0
        %305 = vmatpush.msra.mxu0 0.0
        %306 = vmatpush.msra.mxu0 0.0
        %307 = vmatpush.msra.mxu0 0.0
        %308 = vmatpush.msra.mxu0 0.0
        %309 = vmatpush.msra.mxu0 0.0
        %310 = vmatpush.msra.mxu0 0.0
        %311 = vmatpush.msra.mxu0 0.0
        %312 = vmatpush.msra.mxu0 %v297
        %313 = vmatpush.msra.mxu0 %v296
        %314 = vmatpush.msra.mxu0 %v295
        %315 = vmatpush.msra.mxu0 %v294
        %316 = vmatpush.msra.mxu0 %v293
        %317 = vmatpush.msra.mxu0 %v292
        %318 = vmatpush.msra.mxu0 %v291
        %319 = vmatpush.msra.mxu0 %v290
        %320 = vmatmul.f32.gmra.mxu0 %v299
        %v321 = vpop.f32.mrf.mxu0
        %v322 = vadd.f32 0.0, %v321
        %323 = vmatmul.f32.gmra.mxu0 %v302
        %v324 = vpop.f32.mrf.mxu0
        %v325 = vadd.f32 0.0, %v324
        %326 = vdwg.mxu0
        %v327 = vperm.slane %v177, 0
        %vm328 = vcmask 130048
        %v330 = vsel %vm328, %v322, 0
        %v333 = vsel %vm328, %v325, 0
        %335 = vmatpush.msra.mxu0 0.0
        %336 = vmatpush.msra.mxu0 0.0
        %337 = vmatpush.msra.mxu0 0.0
        %338 = vmatpush.msra.mxu0 0.0
        %339 = vmatpush.msra.mxu0 0.0
        %340 = vmatpush.msra.mxu0 0.0
        %341 = vmatpush.msra.mxu0 0.0
        %342 = vmatpush.msra.mxu0 0.0
        %343 = vmatpush.msra.mxu0 0.0
        %344 = vmatpush.msra.mxu0 0.0
        %345 = vmatpush.msra.mxu0 0.0
        %346 = vmatpush.msra.mxu0 0.0
        %347 = vmatpush.msra.mxu0 0.0
        %348 = vmatpush.msra.mxu0 0.0
        %349 = vmatpush.msra.mxu0 %v179
        %350 = vmatpush.msra.mxu0 %v178
        %351 = vmatmul.f32.gmra.mxu0 %v330
        %v352 = vpop.f32.mrf.mxu0
        %v353 = vadd.f32 %v327, %v352
        %354 = vmatmul.f32.gmra.mxu0 %v333
        %v355 = vpop.f32.mrf.mxu0
        %v356 = vadd.f32 %v327, %v355
        %357 = vdwg.mxu0
        %v358 = vmul.f32 %v353, %v356
        %v360 = vsel %vm328, %v358, 0
        %362 = vmatpush.msra.mxu0 0.0
        %363 = vmatpush.msra.mxu0 0.0
        %364 = vmatpush.msra.mxu0 0.0
        %365 = vmatpush.msra.mxu0 0.0
        %366 = vmatpush.msra.mxu0 0.0
        %367 = vmatpush.msra.mxu0 0.0
        %368 = vmatpush.msra.mxu0 0.0
        %369 = vmatpush.msra.mxu0 0.0
        %370 = vmatpush.msra.mxu0 0.0
        %371 = vmatpush.msra.mxu0 0.0
        %372 = vmatpush.msra.mxu0 0.0
        %373 = vmatpush.msra.mxu0 0.0
        %374 = vmatpush.msra.mxu0 0.0
        %375 = vmatpush.msra.mxu0 0.0
        %376 = vmatpush.msra.mxu0 %v181
        %377 = vmatpush.msra.mxu0 %v180
        %378 = vmatmul.f32.gmra.mxu0 %v360
        %v379 = vpop.f32.mrf.mxu0
        %v380 = vadd.f32 0.0, %v379
        %381 = vdwg.mxu0
        %vm382 = vcmask 15360
        %383 = vst.msk [vmem:[%s164] sm:$0xff] %vm382, %v380
        %p384 = scmp.lt.s32.totalorder %s16, 1
        %s385 = scalar_select %p384, %s16, 1
        %s386 = smul.addr %s385, 8
        %s387 = scalar_lea.vmem %s2, %s386
        // Predicated region
        $region33: #{tpu_custom_call.1} parent=27 // pred_check
          %p388 = pneg %p81
        $region34: #{tpu_custom_call.1} parent=27 // pred_check_branch
          %390 = sbr.rel (%p388) target = $region36
        $region35: #{tpu_custom_call.1} parent=27 // pred_region
          _
        $region36: #{tpu_custom_call.1} parent=27 // pred_fallthru
          _
      $region28: #{tpu_custom_call.1} parent=5 // pred_fallthru
        _
      %p391 = scmp.le.s32.totalorder 2, %s11
      // Predicated region
      $region37: #{tpu_custom_call.1} parent=5 // pred_check
        %p392 = pneg %p391
      $region38: #{tpu_custom_call.1} parent=5 // pred_check_branch
        %394 = sbr.rel (%p392) target = $region40
      $region39: #{tpu_custom_call.1} parent=5 // pred_region
        %s395 = ssub.s32 %s11, 2
        // Predicated region
        $region41: #{tpu_custom_call.1} parent=39 // pred_check
          %p396 = pneg %p87
        $region42: #{tpu_custom_call.1} parent=39 // pred_check_branch
          %398 = sbr.rel (%p396) target = $region44
        $region43: #{tpu_custom_call.1} parent=39 // pred_region
          %p399 = scmp.lt.s32.totalorder %s17, 1
          %s400 = scalar_select %p399, %s17, 1
          %s401 = smul.addr %s400, 8
          %s402 = scalar_lea.vmem %s2, %s401
        $region44: #{tpu_custom_call.1} parent=39 // pred_fallthru
          _
      $region40: #{tpu_custom_call.1} parent=5 // pred_fallthru
        _
    $region6: #{tpu_custom_call.1} parent=1 // loop_footer
      %s15 = sadd.s32 1, %s11
    $region7: #{tpu_custom_call.1} parent=1 // loop_footer_branch
      %10 = sbr.rel target = $region3
    $region8: #{tpu_custom_call.1} parent=1 // loop_exit
      _
    %403 = vsyncpa [#allocation3], 1
    %s404 = scalar_lea.sflag [#allocation3], 1
    %405 = vsyncpa %s404, 1

</llo_original>
